<compile_context>
chip_gen: v6e
topology: v6e:2x2x1
jax: 0.10.0
libtpu: 0.0.40
codegen_flags: <defaults>
</compile_context>

<pallas_src>
import jax
import jax.numpy as jnp
from jax.experimental import pallas as pl
from jax.experimental.pallas import tpu as pltpu


# ----------------------------------------------------------------------------
# Fused kernel: 4x4 max pool (== two 2x2 pools) + folded 1x1 convs (+ bias)
# ----------------------------------------------------------------------------

def _spe_kernel(x_ref, sel_ref, wf_ref, bf_ref, o_ref):
    """One (batch, row-tile) grid step.

    x_ref  : (1, C, th, 4, W)  VMEM, NCHW with the 4-row pool window split out
    sel_ref: (W-3, Wo)         VMEM, 0/1 matrix selecting lane 4*j
    wf_ref : (C1, C)           SMEM, folded 1x1-conv weight (pec o fusion)
    bf_ref : (C1,)             SMEM, folded bias
    o_ref  : (1, C1, th, Wo)   VMEM, NCHW output tile (Wo on lanes)
    """
    _, c, th, _, w = x_ref.shape
    c1 = o_ref.shape[1]
    wo = o_ref.shape[3]
    lw = w - 3

    # Height pool: the 4 rows of the pooling window sit on the size-4
    # sublane-group dim exposed by the wrapper's free reshape.
    p = jnp.max(x_ref[...], axis=3)                         # (1, C, th, W)

    # Width pool, stage 1: sliding max over 4 adjacent lanes using four
    # statically lane-shifted views (rotate-half-style minor-dim slicing);
    # m[..., i] = max(p[..., i:i+4]).
    m = jnp.maximum(jnp.maximum(p[..., 0:lw], p[..., 1:lw + 1]),
                    jnp.maximum(p[..., 2:lw + 2], p[..., 3:lw + 3]))

    # Width pool, stage 2: keep only columns 4*j via a matmul with a constant
    # 0/1 selection matrix, so the pooled result stays lane-dense on Wo.
    # (Products/sums with 0/1 are exact, so this is still an exact max-pool.)
    pooled = jnp.dot(m.reshape(c * th, lw), sel_ref[...],
                     preferred_element_type=jnp.float32)    # (C*th, Wo)
    pooled = pooled.reshape(c, th, wo)

    # Folded 1x1 convs (statistical_fusion followed by pec): per-pixel channel
    # mix as VPU multiply-accumulates with scalar weights from SMEM so pixels
    # stay on lanes.  (Switch to a jnp.dot if C/C1 are >= ~128.)
    for oc in range(c1):
        acc = pooled[0] * wf_ref[oc, 0]
        for ic in range(1, c):
            acc = acc + pooled[ic] * wf_ref[oc, ic]
        o_ref[0, oc] = (acc + bf_ref[oc]).astype(o_ref.dtype)


# ----------------------------------------------------------------------------
# VMEM accounting helpers (tile-padded bytes, per-generation capacity)
# ----------------------------------------------------------------------------

def _pad_up(v, m):
    return -(-v // m) * m


def _padded_block_bytes(shape, itemsize=4):
    """VMEM bytes of one block: trailing two dims pad to (8, 128) tiles."""
    if len(shape) == 1:
        return _pad_up(shape[0], 128) * itemsize
    *lead, sub, lane = shape
    nlead = 1
    for d in lead:
        nlead *= d
    return nlead * _pad_up(sub, 8) * _pad_up(lane, 128) * itemsize


def _vmem_capacity_bytes():
    """Physical VMEM per TensorCore (64 MiB on v7x, 128 MiB on v5e/v6e)."""
    try:
        cap = getattr(pltpu.get_tpu_info(), "vmem_capacity_bytes", None)
        if cap:
            return int(cap)
    except Exception:
        pass
    return 64 * 1024 * 1024


# ----------------------------------------------------------------------------
# Wrapper (PyTorch NCHW convention in AND out — no transposes)
# ----------------------------------------------------------------------------

def spe_forward(x_nchw, params):
    w1, b1, w2, b2 = params["w1"], params["b1"], params["w2"], params["b2"]
    n, c, h, w = x_nchw.shape
    ho, wo = h // 4, w // 4                 # floor(floor(/2)/2) == floor(/4)
    assert ho >= 1 and wo >= 1, "input spatial dims must be >= 4"
    wb = 4 * wo
    c1 = w1.shape[0]

    # Crop to the region the floor-truncating pools actually read, then expose
    # the 4-row pool window with a FREE contiguous reshape (still NCHW; the
    # image width W stays the minor/lane dim, so the DMA stays lane-dense).
    x = x_nchw[:, :, :4 * ho, :wb].reshape(n, c, ho, 4, wb)

    # Fold the two 1x1 convs (no nonlinearity between them):
    #   y = W2 (W1 p + b1) + b2 = (W2 @ W1) p + (W2 @ b1 + b2)
    w1m = w1[:, :, 0, 0]                                    # (C1, C)
    w2m = w2[:, :, 0, 0]                                    # (C1, C1)
    wf = (w2m @ w1m).astype(jnp.float32)                    # (C1, C)
    bf = (w2m @ b1 + b2).astype(jnp.float32)                # (C1,)

    # 0/1 selection matrix: pooled column j == sliding-max lane 4*j.
    lw = wb - 3
    sel = (jnp.arange(lw, dtype=jnp.int32)[:, None]
           == 4 * jnp.arange(wo, dtype=jnp.int32)[None, :]).astype(jnp.float32)

    # ---- row-tile selection with tile-padded VMEM accounting ----------------
    vmem_cap = _vmem_capacity_bytes()
    budget = max(vmem_cap // 4, 4 << 20)

    def vmem_need(th):
        in_b = _padded_block_bytes((1, c, th, 4, wb))
        out_b = _padded_block_bytes((1, c1, th, wo))
        sel_b = _padded_block_bytes((lw, wo))
        # x2 pipeline double-buffering + ~3 input-block-sized live temporaries.
        return 2 * (in_b + out_b + sel_b) + 3 * in_b

    divisors = [d for d in range(ho, 0, -1) if ho % d == 0]
    aligned = [d for d in divisors if d == ho or d % 8 == 0]
    th = 1
    for cand in aligned + divisors:          # prefer (8-aligned or full) tiles
        if vmem_need(cand) <= budget:
            th = cand
            break
    # v7x megacore: keep at least 2 parallel grid steps when possible.
    if n * (ho // th) < 2:
        for cand in aligned + divisors:
            if ho // cand >= 2 and vmem_need(cand) <= budget:
                th = cand
                break
    vmem_limit = int(min(vmem_cap, max(vmem_need(th) + (8 << 20), 32 << 20)))

    out = pl.pallas_call(
        _spe_kernel,
        out_shape=jax.ShapeDtypeStruct((n, c1, ho, wo), jnp.float32),
        grid_spec=pltpu.PrefetchScalarGridSpec(
            num_scalar_prefetch=0,
            grid=(n, ho // th),
            in_specs=[
                pl.BlockSpec((1, c, th, 4, wb), lambda b, i: (b, 0, i, 0, 0)),
                pl.BlockSpec((lw, wo), lambda b, i: (0, 0)),
                pl.BlockSpec(memory_space=pltpu.MemorySpace.SMEM),  # wf
                pl.BlockSpec(memory_space=pltpu.MemorySpace.SMEM),  # bf
            ],
            out_specs=pl.BlockSpec((1, c1, th, wo), lambda b, i: (b, 0, i, 0)),
        ),
        compiler_params=pltpu.CompilerParams(
            dimension_semantics=("parallel", "parallel"),
            vmem_limit_bytes=vmem_limit),
    )(x, sel, wf, bf)

    return out                                              # already NCHW


# ----------------------------------------------------------------------------
# Deterministic parameters (PyTorch-style uniform init) and pure-JAX reference
# ----------------------------------------------------------------------------

def init_params(key, in_channels, out_channels):
    k1, k2, k3, k4 = jax.random.split(key, 4)
    s1 = (1.0 / in_channels) ** 0.5
    s2 = (1.0 / out_channels) ** 0.5
    return {
        "w1": jax.random.uniform(k1, (out_channels, in_channels, 1, 1),
                                 jnp.float32, -s1, s1),
        "b1": jax.random.uniform(k2, (out_channels,), jnp.float32, -s1, s1),
        "w2": jax.random.uniform(k3, (out_channels, out_channels, 1, 1),
                                 jnp.float32, -s2, s2),
        "b2": jax.random.uniform(k4, (out_channels,), jnp.float32, -s2, s2),
    }


def _spe_ref(x_nchw, params):
    """Pure-JAX/XLA reference of SPEModule.forward for correctness checking."""
    p = jax.lax.reduce_window(x_nchw, -jnp.inf, jax.lax.max,
                              (1, 1, 2, 2), (1, 1, 2, 2), "VALID")
    p = jax.lax.reduce_window(p, -jnp.inf, jax.lax.max,
                              (1, 1, 2, 2), (1, 1, 2, 2), "VALID")
    w1 = params["w1"][:, :, 0, 0]
    w2 = params["w2"][:, :, 0, 0]
    h = jnp.einsum("nchw,oc->nohw", p, w1) + params["b1"][None, :, None, None]
    y = jnp.einsum("nchw,oc->nohw", h, w2) + params["b2"][None, :, None, None]
    return y


if __name__ == "__main__":
    key = jax.random.PRNGKey(0)
    in_channels, out_channels = 4, 2
    params = init_params(jax.random.fold_in(key, 1), in_channels, out_channels)
    x = jax.random.normal(jax.random.fold_in(key, 2),
                          (2, in_channels, 16, 16), jnp.float32)

    out = jax.block_until_ready(spe_forward(x, params))

    assert out.shape == (2, out_channels, 4, 4), out.shape
    assert out.dtype == jnp.float32
    assert bool(jnp.all(jnp.isfinite(out)))

    ref = _spe_ref(x, params)
    err = float(jnp.max(jnp.abs(out - ref)))
    assert bool(jnp.allclose(out, ref, atol=1e-5, rtol=1e-5)), err

    print("KERNEL_OK")
</pallas_src>

<mosaic_0001>
module attributes {stable_mosaic.version = 11 : i64} {
  func.func @_spe_kernel(%arg0: i32, %arg1: i32, %arg2: memref<1x4x4x4x16xf32, #tpu.memory_space<vmem>>, %arg3: memref<13x4xf32, #tpu.memory_space<vmem>>, %arg4: memref<2x4xf32, #tpu.memory_space<smem>>, %arg5: memref<2xf32, #tpu.memory_space<smem>>, %arg6: memref<1x2x4x4xf32, #tpu.memory_space<vmem>>) attributes {dimension_semantics = [#tpu.dimension_semantics<parallel>, #tpu.dimension_semantics<parallel>], iteration_bounds = array<i64: 2, 1>, scalar_prefetch = 0 : i64, scratch_operands = 0 : i64, tpu.core_type = #tpu.core_type<tc>, window_params = [{transform_indices = @transform_0, window_bounds = array<i64: 1, 4, 4, 4, 16>}, {pipeline_mode = #tpu.pipeline_mode<synchronous>, transform_indices = @transform_1, window_bounds = array<i64: 13, 4>}, {transform_indices = @transform_2, window_bounds = array<i64: 2, 4>}, {transform_indices = @transform_3, window_bounds = array<i64: 2>}, {transform_indices = @transform_4, window_bounds = array<i64: 1, 2, 4, 4>}]} {
    %c0 = arith.constant 0 : index
    %c0_0 = arith.constant 0 : index
    %c0_1 = arith.constant 0 : index
    %c0_2 = arith.constant 0 : index
    %c0_3 = arith.constant 0 : index
    %0 = vector.load %arg2[%c0, %c0_0, %c0_1, %c0_2, %c0_3] : memref<1x4x4x4x16xf32, #tpu.memory_space<vmem>>, vector<1x4x4x4x16xf32>
    %cst = arith.constant dense<0xFF800000> : vector<1x4x4x16xf32>
    %1 = vector.multi_reduction <maximumf>, %0, %cst [3] : vector<1x4x4x4x16xf32> to vector<1x4x4x16xf32>
    %2 = vector.extract_strided_slice %1 {offsets = [0, 0, 0, 0], sizes = [1, 4, 4, 13], strides = [1, 1, 1, 1]} : vector<1x4x4x16xf32> to vector<1x4x4x13xf32>
    %3 = vector.extract_strided_slice %1 {offsets = [0, 0, 0, 1], sizes = [1, 4, 4, 13], strides = [1, 1, 1, 1]} : vector<1x4x4x16xf32> to vector<1x4x4x13xf32>
    %4 = arith.maximumf %2, %3 : vector<1x4x4x13xf32>
    %5 = vector.extract_strided_slice %1 {offsets = [0, 0, 0, 2], sizes = [1, 4, 4, 13], strides = [1, 1, 1, 1]} : vector<1x4x4x16xf32> to vector<1x4x4x13xf32>
    %6 = vector.extract_strided_slice %1 {offsets = [0, 0, 0, 3], sizes = [1, 4, 4, 13], strides = [1, 1, 1, 1]} : vector<1x4x4x16xf32> to vector<1x4x4x13xf32>
    %7 = arith.maximumf %5, %6 : vector<1x4x4x13xf32>
    %8 = arith.maximumf %4, %7 : vector<1x4x4x13xf32>
    %9 = vector.shape_cast %8 : vector<1x4x4x13xf32> to vector<16x13xf32>
    %c0_4 = arith.constant 0 : index
    %c0_5 = arith.constant 0 : index
    %10 = vector.load %arg3[%c0_4, %c0_5] : memref<13x4xf32, #tpu.memory_space<vmem>>, vector<13x4xf32>
    %cst_6 = arith.constant dense<0.000000e+00> : vector<16x4xf32>
    %11 = tpu.matmul %9, %10, %cst_6 {dimension_numbers = #tpu.dot_dimension_numbers<[1], [0], [0], [1], [0, 0, 1, 1], [], []>} : vector<16x13xf32>, vector<13x4xf32>, vector<16x4xf32> -> vector<16x4xf32>
    %12 = vector.shape_cast %11 : vector<16x4xf32> to vector<4x4x4xf32>
    %13 = vector.extract_strided_slice %12 {offsets = [0, 0, 0], sizes = [1, 4, 4], strides = [1, 1, 1]} : vector<4x4x4xf32> to vector<1x4x4xf32>
    %14 = vector.shape_cast %13 : vector<1x4x4xf32> to vector<4x4xf32>
    %c0_7 = arith.constant 0 : index
    %c0_8 = arith.constant 0 : index
    %15 = memref.load %arg4[%c0_7, %c0_8] : memref<2x4xf32, #tpu.memory_space<smem>>
    %16 = vector.broadcast %15 : f32 to vector<4x4xf32>
    %17 = arith.mulf %14, %16 : vector<4x4xf32>
    %18 = vector.extract_strided_slice %12 {offsets = [1, 0, 0], sizes = [1, 4, 4], strides = [1, 1, 1]} : vector<4x4x4xf32> to vector<1x4x4xf32>
    %19 = vector.shape_cast %18 : vector<1x4x4xf32> to vector<4x4xf32>
    %c0_9 = arith.constant 0 : index
    %c1 = arith.constant 1 : index
    %20 = memref.load %arg4[%c0_9, %c1] : memref<2x4xf32, #tpu.memory_space<smem>>
    %21 = vector.broadcast %20 : f32 to vector<4x4xf32>
    %22 = arith.mulf %19, %21 : vector<4x4xf32>
    %23 = arith.addf %17, %22 : vector<4x4xf32>
    %24 = vector.extract_strided_slice %12 {offsets = [2, 0, 0], sizes = [1, 4, 4], strides = [1, 1, 1]} : vector<4x4x4xf32> to vector<1x4x4xf32>
    %25 = vector.shape_cast %24 : vector<1x4x4xf32> to vector<4x4xf32>
    %c0_10 = arith.constant 0 : index
    %c2 = arith.constant 2 : index
    %26 = memref.load %arg4[%c0_10, %c2] : memref<2x4xf32, #tpu.memory_space<smem>>
    %27 = vector.broadcast %26 : f32 to vector<4x4xf32>
    %28 = arith.mulf %25, %27 : vector<4x4xf32>
    %29 = arith.addf %23, %28 : vector<4x4xf32>
    %30 = vector.extract_strided_slice %12 {offsets = [3, 0, 0], sizes = [1, 4, 4], strides = [1, 1, 1]} : vector<4x4x4xf32> to vector<1x4x4xf32>
    %31 = vector.shape_cast %30 : vector<1x4x4xf32> to vector<4x4xf32>
    %c0_11 = arith.constant 0 : index
    %c3 = arith.constant 3 : index
    %32 = memref.load %arg4[%c0_11, %c3] : memref<2x4xf32, #tpu.memory_space<smem>>
    %33 = vector.broadcast %32 : f32 to vector<4x4xf32>
    %34 = arith.mulf %31, %33 : vector<4x4xf32>
    %35 = arith.addf %29, %34 : vector<4x4xf32>
    %c0_12 = arith.constant 0 : index
    %36 = memref.load %arg5[%c0_12] : memref<2xf32, #tpu.memory_space<smem>>
    %37 = vector.broadcast %36 : f32 to vector<4x4xf32>
    %38 = arith.addf %35, %37 : vector<4x4xf32>
    %c0_13 = arith.constant 0 : index
    %c0_14 = arith.constant 0 : index
    %c0_15 = arith.constant 0 : index
    %c0_16 = arith.constant 0 : index
    %39 = vector.load %arg6[%c0_13, %c0_14, %c0_15, %c0_16] : memref<1x2x4x4xf32, #tpu.memory_space<vmem>>, vector<1x1x4x4xf32>
    %40 = vector.shape_cast %39 : vector<1x1x4x4xf32> to vector<4x4xf32>
    %41 = vector.shape_cast %38 : vector<4x4xf32> to vector<1x1x4x4xf32>
    tpu.vector_store %arg6[%c0_13, %c0_14, %c0_15, %c0_16], %41 {strides = array<i32>} : memref<1x2x4x4xf32, #tpu.memory_space<vmem>>, vector<1x1x4x4xf32>,
    %42 = vector.extract_strided_slice %12 {offsets = [0, 0, 0], sizes = [1, 4, 4], strides = [1, 1, 1]} : vector<4x4x4xf32> to vector<1x4x4xf32>
    %43 = vector.shape_cast %42 : vector<1x4x4xf32> to vector<4x4xf32>
    %c1_17 = arith.constant 1 : index
    %c0_18 = arith.constant 0 : index
    %44 = memref.load %arg4[%c1_17, %c0_18] : memref<2x4xf32, #tpu.memory_space<smem>>
    %45 = vector.broadcast %44 : f32 to vector<4x4xf32>
    %46 = arith.mulf %43, %45 : vector<4x4xf32>
    %47 = vector.extract_strided_slice %12 {offsets = [1, 0, 0], sizes = [1, 4, 4], strides = [1, 1, 1]} : vector<4x4x4xf32> to vector<1x4x4xf32>
    %48 = vector.shape_cast %47 : vector<1x4x4xf32> to vector<4x4xf32>
    %c1_19 = arith.constant 1 : index
    %c1_20 = arith.constant 1 : index
    %49 = memref.load %arg4[%c1_19, %c1_20] : memref<2x4xf32, #tpu.memory_space<smem>>
    %50 = vector.broadcast %49 : f32 to vector<4x4xf32>
    %51 = arith.mulf %48, %50 : vector<4x4xf32>
    %52 = arith.addf %46, %51 : vector<4x4xf32>
    %53 = vector.extract_strided_slice %12 {offsets = [2, 0, 0], sizes = [1, 4, 4], strides = [1, 1, 1]} : vector<4x4x4xf32> to vector<1x4x4xf32>
    %54 = vector.shape_cast %53 : vector<1x4x4xf32> to vector<4x4xf32>
    %c1_21 = arith.constant 1 : index
    %c2_22 = arith.constant 2 : index
    %55 = memref.load %arg4[%c1_21, %c2_22] : memref<2x4xf32, #tpu.memory_space<smem>>
    %56 = vector.broadcast %55 : f32 to vector<4x4xf32>
    %57 = arith.mulf %54, %56 : vector<4x4xf32>
    %58 = arith.addf %52, %57 : vector<4x4xf32>
    %59 = vector.extract_strided_slice %12 {offsets = [3, 0, 0], sizes = [1, 4, 4], strides = [1, 1, 1]} : vector<4x4x4xf32> to vector<1x4x4xf32>
    %60 = vector.shape_cast %59 : vector<1x4x4xf32> to vector<4x4xf32>
    %c1_23 = arith.constant 1 : index
    %c3_24 = arith.constant 3 : index
    %61 = memref.load %arg4[%c1_23, %c3_24] : memref<2x4xf32, #tpu.memory_space<smem>>
    %62 = vector.broadcast %61 : f32 to vector<4x4xf32>
    %63 = arith.mulf %60, %62 : vector<4x4xf32>
    %64 = arith.addf %58, %63 : vector<4x4xf32>
    %c1_25 = arith.constant 1 : index
    %65 = memref.load %arg5[%c1_25] : memref<2xf32, #tpu.memory_space<smem>>
    %66 = vector.broadcast %65 : f32 to vector<4x4xf32>
    %67 = arith.addf %64, %66 : vector<4x4xf32>
    %c0_26 = arith.constant 0 : index
    %c1_27 = arith.constant 1 : index
    %c0_28 = arith.constant 0 : index
    %c0_29 = arith.constant 0 : index
    %68 = vector.load %arg6[%c0_26, %c1_27, %c0_28, %c0_29] : memref<1x2x4x4xf32, #tpu.memory_space<vmem>>, vector<1x1x4x4xf32>
    %69 = vector.shape_cast %68 : vector<1x1x4x4xf32> to vector<4x4xf32>
    %70 = vector.shape_cast %67 : vector<4x4xf32> to vector<1x1x4x4xf32>
    tpu.vector_store %arg6[%c0_26, %c1_27, %c0_28, %c0_29], %70 {strides = array<i32>} : memref<1x2x4x4xf32, #tpu.memory_space<vmem>>, vector<1x1x4x4xf32>,
    return
  }
  func.func @transform_0(%arg0: i32, %arg1: i32) -> (i32, i32, i32, i32, i32) {
    %c0_i32 = arith.constant 0 : i32
    %c0_i32_0 = arith.constant 0 : i32
    %c0_i32_1 = arith.constant 0 : i32
    %c0_i32_2 = arith.constant 0 : i32
    return %arg0, %c0_i32, %arg1, %c0_i32_0, %c0_i32_1 : i32, i32, i32, i32, i32
  }
  func.func @transform_1(%arg0: i32, %arg1: i32) -> (i32, i32) {
    %c0_i32 = arith.constant 0 : i32
    %c0_i32_0 = arith.constant 0 : i32
    %c0_i32_1 = arith.constant 0 : i32
    return %c0_i32, %c0_i32_0 : i32, i32
  }
  func.func @transform_2(%arg0: i32, %arg1: i32) -> (i32, i32) {
    %c0_i32 = arith.constant 0 : i32
    %c0_i32_0 = arith.constant 0 : i32
    %c0_i32_1 = arith.constant 0 : i32
    return %c0_i32, %c0_i32_0 : i32, i32
  }
  func.func @transform_3(%arg0: i32, %arg1: i32) -> i32 {
    %c0_i32 = arith.constant 0 : i32
    %c0_i32_0 = arith.constant 0 : i32
    return %c0_i32 : i32
  }
  func.func @transform_4(%arg0: i32, %arg1: i32) -> (i32, i32, i32, i32) {
    %c0_i32 = arith.constant 0 : i32
    %c0_i32_0 = arith.constant 0 : i32
    %c0_i32_1 = arith.constant 0 : i32
    return %arg0, %c0_i32, %arg1, %c0_i32_0 : i32, i32, i32, i32
  }
}

</mosaic_0001>

<llo_original>
// kernel: tpu_custom_call.1
$region0: #{tpu_custom_call.1}
  #allocation0 [shape = 'u32[]', space=smem, size = 0x4, offset = 0x4, fixed_abs, tag = 'smem constant byte address 0x4 - core index']
  #allocation1 [shape = 'u32[144,128]{1,0:T(1,128)}', space=vmem, size = 0x12000, scoped, tag = 'internal scratch']
  %s0 = inlined_call_operand.hbm [shape: f32[2,4,4,4,16], index: 0, kind: input, shape index: {}]
  %s1 = inlined_call_operand.vmem [shape: f32[13,4], index: 1, kind: input, shape index: {}]
  %s2 = inlined_call_operand.vmem [shape: f32[2,4], index: 2, kind: input, shape index: {}]
  %s3 = inlined_call_operand.vmem [shape: f32[2], index: 3, kind: input, shape index: {}]
  %s4 = inlined_call_operand.hbm [shape: f32[2,2,4,4], index: 4, kind: output, shape index: {}]
  %s5 = sld [smem:[#allocation0]]
  $region61: #{tpu_custom_call.1} parent=0
    _
  %s7 = ssub.s32 1, %s5
  %s8 = scalar_select 0, %s7, %s5
  $region1: #{tpu_custom_call.1} parent=0
    #allocation2 [shape = 'u8[65536]{0}', space=vmem, size = 0x10000, scoped, tag = 'input window, operand 0']
    #allocation3 [shape = 's32[2]{0}', space=sflag, size = 0x8, scoped, tag = 'scoped memory for tpu_custom_call.1']
    #allocation4 [shape = 's32[2]{0}', space=sflag, size = 0x8, scoped, tag = 'scoped memory for tpu_custom_call.1']
    #allocation5 [shape = 's32[2]{0}', space=sflag, size = 0x8, scoped, tag = 'scoped memory for tpu_custom_call.1']
    #allocation6 [shape = 'u8[1024]{0}', space=smem, size = 0x400, scoped, tag = 'input window, operand 2, single buffered']
    #allocation7 [shape = 'u8[512]{0}', space=smem, size = 0x200, scoped, tag = 'input window, operand 3, single buffered']
    #allocation8 [shape = 's32[1]{0}', space=sflag, size = 0x4, scoped, tag = 'scoped memory for tpu_custom_call.1']
    #allocation9 [shape = 'u8[8192]{0}', space=vmem, size = 0x2000, scoped, tag = 'output window, operand 0']
    %9 = vsyncpa [#allocation3], 0
    %s10 = scalar_lea.sflag [#allocation3], 1
    %11 = vsyncpa %s10, 0
    %12 = vsyncpa [#allocation5], 0
    %13 = vsyncpa [#allocation8], 0
    %14 = vsyncpa [#allocation4], 0
    %s15 = scalar_lea.sflag [#allocation4], 1
    %16 = vsyncpa %s15, 0
    loop: start=0, step=1, limit=4
    $region2: #{tpu_custom_call.1} parent=1 // loop_pre_header
      _
    $region3: #{tpu_custom_call.1} parent=1 // loop_header
      %s18 = sphi 0, %s22
      %p19 = scmp.ge.s32.totalorder %s18, 4
      %s25 = sphi 0, %s37
      %s26 = sphi 0, %s33
      %s27 = sphi 0, %s25
      %s28 = sphi 0, %s26
      %s29 = sphi 0, %s27
      %s30 = sphi 0, %s28
      %s42 = sphi 0, %s44
      %s45 = sphi 0, %s42
      %s46 = sphi 0, %s45
      %s62 = sphi 0, %s46
      %s66 = sphi 0, %s66
      %s68 = sphi 0, %s66
      %s69 = sphi 0, %s68
      %s83 = sphi 0, %s69
      %s87 = sphi 0, %s87
      %s89 = sphi 0, %s87
      %s90 = sphi 0, %s89
      %s104 = sphi 0, %s90
      %s108 = sphi 0, %s108
      %s110 = sphi 0, %s108
      %s111 = sphi 0, %s110
      %s125 = sphi 0, %s111
      %s133 = sphi 0, %s135
      %s136 = sphi 0, %s133
      %s137 = sphi 0, %s136
      %s153 = sphi 0, %s137
    $region4: #{tpu_custom_call.1} parent=1 // loop_header_branch
      %21 = sbr.rel (%p19) target = $region8
    $region5: #{tpu_custom_call.1} parent=1 // loop_body
      %s23 = ssub.s32 %s18, 1
      %s24 = ssub.s32 %s18, 2
      %s31 = sadd.s32 1, %s26
      %p32 = scmp.ge.s32.totalorder %s31, 1
      %s33 = scalar_select %p32, 0, %s31
      %s34 = sadd.s32 1, %s25
      %s35 = scalar_select %p32, %s34, %s25
      %p36 = scmp.ge.s32.totalorder %s35, 2
      %s37 = scalar_select %p36, 0, %s35
      %s38 = ssub.s32 %s25, %s37
      %s39 = ssub.s32 %s26, %s33
      %s40 = sor.u32 %s38, %s39
      %p41 = scmp.eq.s32.totalorder %s40, 0
      %s43 = sadd.s32 %s42, 1
      %s44 = scalar_select %p41, %s42, %s43
      %p47 = pneg %p41
      %p48 = scmp.eq.s32.totalorder %s18, 1
      %p49 = por %p47, %p48
      %p50 = scmp.ne.s32.totalorder %s42, %s45
      %p51 = scmp.eq.s32.totalorder %s18, 0
      %p52 = por %p50, %p51
      %p53 = scmp.ne.s32.totalorder %s42, %s45
      %p54 = scmp.eq.s32.totalorder %s23, 1
      %p55 = por %p53, %p54
      %p56 = scmp.ne.s32.totalorder %s45, %s46
      %p57 = scmp.eq.s32.totalorder %s23, 0
      %p58 = por %p56, %p57
      %p59 = scmp.ne.s32.totalorder %s45, %s46
      %p60 = scmp.eq.s32.totalorder %s24, 1
      %p61 = por %p59, %p60
      %p63 = scmp.ne.s32.totalorder %s46, %s62
      %p64 = scmp.eq.s32.totalorder %s24, 0
      %p65 = por %p63, %p64
      %s67 = sadd.s32 %s66, 1
      %p70 = scmp.eq.s32.totalorder %s18, 1
      %p71 = scmp.ne.s32.totalorder %s66, %s68
      %p72 = scmp.eq.s32.totalorder %s18, 0
      %p73 = por %p71, %p72
      %p74 = scmp.ne.s32.totalorder %s66, %s68
      %p75 = scmp.eq.s32.totalorder %s23, 1
      %p76 = por %p74, %p75
      %p77 = scmp.ne.s32.totalorder %s68, %s69
      %p78 = scmp.eq.s32.totalorder %s23, 0
      %p79 = por %p77, %p78
      %p80 = scmp.ne.s32.totalorder %s68, %s69
      %p81 = scmp.eq.s32.totalorder %s24, 1
      %p82 = por %p80, %p81
      %p84 = scmp.ne.s32.totalorder %s69, %s83
      %p85 = scmp.eq.s32.totalorder %s24, 0
      %p86 = por %p84, %p85
      %s88 = sadd.s32 %s87, 1
      %p91 = scmp.eq.s32.totalorder %s18, 1
      %p92 = scmp.ne.s32.totalorder %s87, %s89
      %p93 = scmp.eq.s32.totalorder %s18, 0
      %p94 = por %p92, %p93
      %p95 = scmp.ne.s32.totalorder %s87, %s89
      %p96 = scmp.eq.s32.totalorder %s23, 1
      %p97 = por %p95, %p96
      %p98 = scmp.ne.s32.totalorder %s89, %s90
      %p99 = scmp.eq.s32.totalorder %s23, 0
      %p100 = por %p98, %p99
      %p101 = scmp.ne.s32.totalorder %s89, %s90
      %p102 = scmp.eq.s32.totalorder %s24, 1
      %p103 = por %p101, %p102
      %p105 = scmp.ne.s32.totalorder %s90, %s104
      %p106 = scmp.eq.s32.totalorder %s24, 0
      %p107 = por %p105, %p106
      %s109 = sadd.s32 %s108, 1
      %p112 = scmp.eq.s32.totalorder %s18, 1
      %p113 = scmp.ne.s32.totalorder %s108, %s110
      %p114 = scmp.eq.s32.totalorder %s18, 0
      %p115 = por %p113, %p114
      %p116 = scmp.ne.s32.totalorder %s108, %s110
      %p117 = scmp.eq.s32.totalorder %s23, 1
      %p118 = por %p116, %p117
      %p119 = scmp.ne.s32.totalorder %s110, %s111
      %p120 = scmp.eq.s32.totalorder %s23, 0
      %p121 = por %p119, %p120
      %p122 = scmp.ne.s32.totalorder %s110, %s111
      %p123 = scmp.eq.s32.totalorder %s24, 1
      %p124 = por %p122, %p123
      %p126 = scmp.ne.s32.totalorder %s111, %s125
      %p127 = scmp.eq.s32.totalorder %s24, 0
      %p128 = por %p126, %p127
      %s129 = ssub.s32 %s25, %s37
      %s130 = ssub.s32 %s26, %s33
      %s131 = sor.u32 %s129, %s130
      %p132 = scmp.eq.s32.totalorder %s131, 0
      %s134 = sadd.s32 %s133, 1
      %s135 = scalar_select %p132, %s133, %s134
      %p138 = pneg %p132
      %p139 = scmp.eq.s32.totalorder %s18, 1
      %p140 = por %p138, %p139
      %p141 = scmp.ne.s32.totalorder %s133, %s136
      %p142 = scmp.eq.s32.totalorder %s18, 0
      %p143 = por %p141, %p142
      %p144 = scmp.ne.s32.totalorder %s133, %s136
      %p145 = scmp.eq.s32.totalorder %s23, 1
      %p146 = por %p144, %p145
      %p147 = scmp.ne.s32.totalorder %s136, %s137
      %p148 = scmp.eq.s32.totalorder %s23, 0
      %p149 = por %p147, %p148
      %p150 = scmp.ne.s32.totalorder %s136, %s137
      %p151 = scmp.eq.s32.totalorder %s24, 1
      %p152 = por %p150, %p151
      %p154 = scmp.ne.s32.totalorder %s137, %s153
      %p155 = scmp.eq.s32.totalorder %s24, 0
      %p156 = por %p154, %p155
      %p157 = scmp.le.s32.totalorder 1, %s18
      %p158 = scmp.lt.s32.totalorder %s18, 3
      %p159 = pnand %p157, %p158
      %p160 = pneg %p159
      // Predicated region
      $region9: #{tpu_custom_call.1} parent=5 // pred_check
        _
      $region10: #{tpu_custom_call.1} parent=5 // pred_check_branch
        %162 = sbr.rel (%p159) target = $region12
      $region11: #{tpu_custom_call.1} parent=5 // pred_region
        %s163 = ssub.s32 %s18, 1
        // Predicated region
        $region13: #{tpu_custom_call.1} parent=11 // pred_check
          %p164 = pneg %p79
        $region14: #{tpu_custom_call.1} parent=11 // pred_check_branch
          %166 = sbr.rel (%p164) target = $region16
        $region15: #{tpu_custom_call.1} parent=11 // pred_region
          _
        $region16: #{tpu_custom_call.1} parent=11 // pred_fallthru
          _
        // Predicated region
        $region17: #{tpu_custom_call.1} parent=11 // pred_check
          %p167 = pneg %p100
        $region18: #{tpu_custom_call.1} parent=11 // pred_check_branch
          %169 = sbr.rel (%p167) target = $region20
        $region19: #{tpu_custom_call.1} parent=11 // pred_region
          %s171 = ssub.s32 32, 32
          %172 = vsyncadd [#allocation5], %s171
          %s174 = sshll.u32 %s2, 4
          %s175 = int_to_ptr.vmem [resolvable:$true] %s174
          %177 = dma.vmem_to_smem %s175, 32, [#allocation6], [#allocation5]
        $region20: #{tpu_custom_call.1} parent=11 // pred_fallthru
          _
        // Predicated region
        $region21: #{tpu_custom_call.1} parent=11 // pred_check
          %p178 = pneg %p121
        $region22: #{tpu_custom_call.1} parent=11 // pred_check_branch
          %180 = sbr.rel (%p178) target = $region24
        $region23: #{tpu_custom_call.1} parent=11 // pred_region
          %s182 = ssub.s32 16, 16
          %183 = vsyncadd [#allocation8], %s182
          %s185 = sshll.u32 %s3, 4
          %s186 = int_to_ptr.vmem [resolvable:$true] %s185
          %188 = dma.vmem_to_smem %s186, 16, [#allocation7], [#allocation8]
        $region24: #{tpu_custom_call.1} parent=11 // pred_fallthru
          _
      $region12: #{tpu_custom_call.1} parent=5 // pred_fallthru
        _
      %p189 = scmp.lt.s32.totalorder %s18, 2
      // Predicated region
      $region25: #{tpu_custom_call.1} parent=5 // pred_check
        %p190 = pneg %p189
      $region26: #{tpu_custom_call.1} parent=5 // pred_check_branch
        %192 = sbr.rel (%p190) target = $region28
      $region27: #{tpu_custom_call.1} parent=5 // pred_region
        // Predicated region
        $region29: #{tpu_custom_call.1} parent=27 // pred_check
          %p193 = pneg %p52
        $region30: #{tpu_custom_call.1} parent=27 // pred_check_branch
          %195 = sbr.rel (%p193) target = $region32
        $region31: #{tpu_custom_call.1} parent=27 // pred_region
          %s196 = sand.u32 %s42, 1
          %s197 = scalar_lea.sflag [#allocation3], %s196
          %s198 = sand.u32 %s42, 1
          %s199 = smul.addr %s198, 64
          %s200 = scalar_lea.vmem [#allocation2], %s199
          %s201 = smul.u32 4, %s26
          %s203 = ssub.s32 1024, 1024
          %204 = vsyncadd %s197, %s203
          %s205 = smul.addr %s25, 16
          %s206 = sadd.s32 %s201, %s205
          %s207 = smul.addr %s206, 64
          %s208 = scalar_lea.hbm %s0, %s207
          %s209 = sshll.u32 %s200, 4
          %s210 = int_to_ptr.vmem [resolvable:$true] %s209
          %215 = dma.hbm_to_vmem [thread:$0]  %s208, 1024, %s210, %s197, 64, 64, 4
        $region32: #{tpu_custom_call.1} parent=27 // pred_fallthru
          _
      $region28: #{tpu_custom_call.1} parent=5 // pred_fallthru
        _
      %p216 = scmp.le.s32.totalorder 1, %s18
      %p217 = scmp.lt.s32.totalorder %s18, 3
      %p218 = pnand %p216, %p217
      %p219 = pneg %p218
      // Predicated region
      $region33: #{tpu_custom_call.1} parent=5 // pred_check
        _
      $region34: #{tpu_custom_call.1} parent=5 // pred_check_branch
        %221 = sbr.rel (%p218) target = $region36
      $region35: #{tpu_custom_call.1} parent=5 // pred_region
        %s222 = ssub.s32 %s18, 1
        %s223 = sand.u32 %s45, 1
        %s224 = scalar_lea.sflag [#allocation3], %s223
        %s225 = sand.u32 %s45, 1
        %s226 = smul.addr %s225, 64
        %s227 = scalar_lea.vmem [#allocation2], %s226
        // Predicated region
        $region37: #{tpu_custom_call.1} parent=35 // pred_check
          %p228 = pneg %p58
        $region38: #{tpu_custom_call.1} parent=35 // pred_check_branch
          %230 = sbr.rel (%p228) target = $region40
        $region39: #{tpu_custom_call.1} parent=35 // pred_region
          %231 = dma.done %s224, 1024
        $region40: #{tpu_custom_call.1} parent=35 // pred_fallthru
          _
        // Predicated region
        $region41: #{tpu_custom_call.1} parent=35 // pred_check
          %p232 = pneg %p100
        $region42: #{tpu_custom_call.1} parent=35 // pred_check_branch
          %234 = sbr.rel (%p232) target = $region44
        $region43: #{tpu_custom_call.1} parent=35 // pred_region
          %235 = dma.done [#allocation5], 32
        $region44: #{tpu_custom_call.1} parent=35 // pred_fallthru
          _
        // Predicated region
        $region45: #{tpu_custom_call.1} parent=35 // pred_check
          %p236 = pneg %p121
        $region46: #{tpu_custom_call.1} parent=35 // pred_check_branch
          %238 = sbr.rel (%p236) target = $region48
        $region47: #{tpu_custom_call.1} parent=35 // pred_region
          %239 = dma.done [#allocation8], 16
        $region48: #{tpu_custom_call.1} parent=35 // pred_fallthru
          _
        %240 = sfence
        %s241 = sand.u32 %s45, 1
        %s242 = scalar_lea.sflag [#allocation3], %s241
        %s243 = sand.u32 %s45, 1
        %s244 = smul.addr %s243, 64
        %s245 = scalar_lea.vmem [#allocation2], %s244
        %p246 = pneg %p58
        %p247 = pneg %p55
        %p248 = pneg %p79
        %p249 = pneg %p76
        %p250 = pneg %p100
        %p251 = pneg %p97
        %p252 = pneg %p121
        %p253 = pneg %p118
        %p254 = pneg %p149
        %p255 = pneg %p146
        %s256 = sand.u32 %s136, 1
        %s257 = scalar_lea.sflag [#allocation4], %s256
        %s258 = sand.u32 %s136, 1
        %s259 = smul.addr %s258, 8
        %s260 = scalar_lea.vmem [#allocation9], %s259
        %s261 = smul.u32 4, %s28
        %v262 = vld [vmem:[%s227] sm:$0xf]
        %v263 = vld [vmem:[%s227 + $0x4] sm:$0xf]
        %v264 = vld [vmem:[%s227 + $0x8] sm:$0xf]
        %v265 = vld [vmem:[%s227 + $0xc] sm:$0xf]
        %v266 = vld [vmem:[%s227 + $0x10] sm:$0xf]
        %v267 = vld [vmem:[%s227 + $0x14] sm:$0xf]
        %v268 = vld [vmem:[%s227 + $0x18] sm:$0xf]
        %v269 = vld [vmem:[%s227 + $0x1c] sm:$0xf]
        %v270 = vld [vmem:[%s227 + $0x20] sm:$0xf]
        %v271 = vld [vmem:[%s227 + $0x24] sm:$0xf]
        %v272 = vld [vmem:[%s227 + $0x28] sm:$0xf]
        %v273 = vld [vmem:[%s227 + $0x2c] sm:$0xf]
        %v274 = vld [vmem:[%s227 + $0x30] sm:$0xf]
        %v275 = vld [vmem:[%s227 + $0x34] sm:$0xf]
        %v276 = vld [vmem:[%s227 + $0x38] sm:$0xf]
        %v277 = vld [vmem:[%s227 + $0x3c] sm:$0xf]
        %vm278 = vcmask 125952
        %v279 = vsel %vm278, %v262, -inf
        %v280 = vrot.slane %v279, 4
        %v281 = vmax.f32 %v279, %v280
        %v282 = vrot.slane %v281, 2
        %v283 = vmax.f32 %v281, %v282
        %v284 = vrot.slane %v283, 1
        %v285 = vmax.f32 %v283, %v284
        %v286 = vsel %vm278, %v263, -inf
        %v287 = vrot.slane %v286, 4
        %v288 = vmax.f32 %v286, %v287
        %v289 = vrot.slane %v288, 2
        %v290 = vmax.f32 %v288, %v289
        %v291 = vrot.slane %v290, 1
        %v292 = vmax.f32 %v290, %v291
        %v293 = vsel %vm278, %v264, -inf
        %v294 = vrot.slane %v293, 4
        %v295 = vmax.f32 %v293, %v294
        %v296 = vrot.slane %v295, 2
        %v297 = vmax.f32 %v295, %v296
        %v298 = vrot.slane %v297, 1
        %v299 = vmax.f32 %v297, %v298
        %v300 = vsel %vm278, %v265, -inf
        %v301 = vrot.slane %v300, 4
        %v302 = vmax.f32 %v300, %v301
        %v303 = vrot.slane %v302, 2
        %v304 = vmax.f32 %v302, %v303
        %v305 = vrot.slane %v304, 1
        %v306 = vmax.f32 %v304, %v305
        %v307 = vsel %vm278, %v266, -inf
        %v308 = vrot.slane %v307, 4
        %v309 = vmax.f32 %v307, %v308
        %v310 = vrot.slane %v309, 2
        %v311 = vmax.f32 %v309, %v310
        %v312 = vrot.slane %v311, 1
        %v313 = vmax.f32 %v311, %v312
        %v314 = vsel %vm278, %v267, -inf
        %v315 = vrot.slane %v314, 4
        %v316 = vmax.f32 %v314, %v315
        %v317 = vrot.slane %v316, 2
        %v318 = vmax.f32 %v316, %v317
        %v319 = vrot.slane %v318, 1
        %v320 = vmax.f32 %v318, %v319
        %v321 = vsel %vm278, %v268, -inf
        %v322 = vrot.slane %v321, 4
        %v323 = vmax.f32 %v321, %v322
        %v324 = vrot.slane %v323, 2
        %v325 = vmax.f32 %v323, %v324
        %v326 = vrot.slane %v325, 1
        %v327 = vmax.f32 %v325, %v326
        %v328 = vsel %vm278, %v269, -inf
        %v329 = vrot.slane %v328, 4
        %v330 = vmax.f32 %v328, %v329
        %v331 = vrot.slane %v330, 2
        %v332 = vmax.f32 %v330, %v331
        %v333 = vrot.slane %v332, 1
        %v334 = vmax.f32 %v332, %v333
        %v335 = vsel %vm278, %v270, -inf
        %v336 = vrot.slane %v335, 4
        %v337 = vmax.f32 %v335, %v336
        %v338 = vrot.slane %v337, 2
        %v339 = vmax.f32 %v337, %v338
        %v340 = vrot.slane %v339, 1
        %v341 = vmax.f32 %v339, %v340
        %v342 = vsel %vm278, %v271, -inf
        %v343 = vrot.slane %v342, 4
        %v344 = vmax.f32 %v342, %v343
        %v345 = vrot.slane %v344, 2
        %v346 = vmax.f32 %v344, %v345
        %v347 = vrot.slane %v346, 1
        %v348 = vmax.f32 %v346, %v347
        %v349 = vsel %vm278, %v272, -inf
        %v350 = vrot.slane %v349, 4
        %v351 = vmax.f32 %v349, %v350
        %v352 = vrot.slane %v351, 2
        %v353 = vmax.f32 %v351, %v352
        %v354 = vrot.slane %v353, 1
        %v355 = vmax.f32 %v353, %v354
        %v356 = vsel %vm278, %v273, -inf
        %v357 = vrot.slane %v356, 4
        %v358 = vmax.f32 %v356, %v357
        %v359 = vrot.slane %v358, 2
        %v360 = vmax.f32 %v358, %v359
        %v361 = vrot.slane %v360, 1
        %v362 = vmax.f32 %v360, %v361
        %v363 = vsel %vm278, %v274, -inf
        %v364 = vrot.slane %v363, 4
        %v365 = vmax.f32 %v363, %v364
        %v366 = vrot.slane %v365, 2
        %v367 = vmax.f32 %v365, %v366
        %v368 = vrot.slane %v367, 1
        %v369 = vmax.f32 %v367, %v368
        %v370 = vsel %vm278, %v275, -inf
        %v371 = vrot.slane %v370, 4
        %v372 = vmax.f32 %v370, %v371
        %v373 = vrot.slane %v372, 2
        %v374 = vmax.f32 %v372, %v373
        %v375 = vrot.slane %v374, 1
        %v376 = vmax.f32 %v374, %v375
        %v377 = vsel %vm278, %v276, -inf
        %v378 = vrot.slane %v377, 4
        %v379 = vmax.f32 %v377, %v378
        %v380 = vrot.slane %v379, 2
        %v381 = vmax.f32 %v379, %v380
        %v382 = vrot.slane %v381, 1
        %v383 = vmax.f32 %v381, %v382
        %v384 = vsel %vm278, %v277, -inf
        %v385 = vrot.slane %v384, 4
        %v386 = vmax.f32 %v384, %v385
        %v387 = vrot.slane %v386, 2
        %v388 = vmax.f32 %v386, %v387
        %v389 = vrot.slane %v388, 1
        %v390 = vmax.f32 %v388, %v389
        %407 = vrot.lane.b32.xlu0 %v285, 127
        %v408 = vpop.permute.xlu0 %407
        %409 = vrot.lane.b32.xlu0 %v292, 127
        %v410 = vpop.permute.xlu0 %409
        %411 = vrot.lane.b32.xlu0 %v299, 127
        %v412 = vpop.permute.xlu0 %411
        %413 = vrot.lane.b32.xlu0 %v306, 127
        %v414 = vpop.permute.xlu0 %413
        %415 = vrot.lane.b32.xlu0 %v313, 127
        %v416 = vpop.permute.xlu0 %415
        %417 = vrot.lane.b32.xlu0 %v320, 127
        %v418 = vpop.permute.xlu0 %417
        %419 = vrot.lane.b32.xlu0 %v327, 127
        %v420 = vpop.permute.xlu0 %419
        %421 = vrot.lane.b32.xlu0 %v334, 127
        %v422 = vpop.permute.xlu0 %421
        %423 = vrot.lane.b32.xlu0 %v341, 127
        %v424 = vpop.permute.xlu0 %423
        %425 = vrot.lane.b32.xlu0 %v348, 127
        %v426 = vpop.permute.xlu0 %425
        %427 = vrot.lane.b32.xlu0 %v355, 127
        %v428 = vpop.permute.xlu0 %427
        %429 = vrot.lane.b32.xlu0 %v362, 127
        %v430 = vpop.permute.xlu0 %429
        %431 = vrot.lane.b32.xlu0 %v369, 127
        %v432 = vpop.permute.xlu0 %431
        %433 = vrot.lane.b32.xlu0 %v376, 127
        %v434 = vpop.permute.xlu0 %433
        %435 = vrot.lane.b32.xlu0 %v383, 127
        %v436 = vpop.permute.xlu0 %435
        %437 = vrot.lane.b32.xlu0 %v390, 127
        %v438 = vpop.permute.xlu0 %437
        %v455 = vmax.f32 %v285, %v408
        %v456 = vmax.f32 %v292, %v410
        %v457 = vmax.f32 %v299, %v412
        %v458 = vmax.f32 %v306, %v414
        %v459 = vmax.f32 %v313, %v416
        %v460 = vmax.f32 %v320, %v418
        %v461 = vmax.f32 %v327, %v420
        %v462 = vmax.f32 %v334, %v422
        %v463 = vmax.f32 %v341, %v424
        %v464 = vmax.f32 %v348, %v426
        %v465 = vmax.f32 %v355, %v428
        %v466 = vmax.f32 %v362, %v430
        %v467 = vmax.f32 %v369, %v432
        %v468 = vmax.f32 %v376, %v434
        %v469 = vmax.f32 %v383, %v436
        %v470 = vmax.f32 %v390, %v438
        %487 = vrot.lane.b32.xlu0 %v455, 126
        %v488 = vpop.permute.xlu0 %487
        %489 = vrot.lane.b32.xlu0 %v456, 126
        %v490 = vpop.permute.xlu0 %489
        %491 = vrot.lane.b32.xlu0 %v457, 126
        %v492 = vpop.permute.xlu0 %491
        %493 = vrot.lane.b32.xlu0 %v458, 126
        %v494 = vpop.permute.xlu0 %493
        %495 = vrot.lane.b32.xlu0 %v459, 126
        %v496 = vpop.permute.xlu0 %495
        %497 = vrot.lane.b32.xlu0 %v460, 126
        %v498 = vpop.permute.xlu0 %497
        %499 = vrot.lane.b32.xlu0 %v461, 126
        %v500 = vpop.permute.xlu0 %499
        %501 = vrot.lane.b32.xlu0 %v462, 126
        %v502 = vpop.permute.xlu0 %501
        %503 = vrot.lane.b32.xlu0 %v463, 126
        %v504 = vpop.permute.xlu0 %503
        %505 = vrot.lane.b32.xlu0 %v464, 126
        %v506 = vpop.permute.xlu0 %505
        %507 = vrot.lane.b32.xlu0 %v465, 126
        %v508 = vpop.permute.xlu0 %507
        %509 = vrot.lane.b32.xlu0 %v466, 126
        %v510 = vpop.permute.xlu0 %509
        %511 = vrot.lane.b32.xlu0 %v467, 126
        %v512 = vpop.permute.xlu0 %511
        %513 = vrot.lane.b32.xlu0 %v468, 126
        %v514 = vpop.permute.xlu0 %513
        %515 = vrot.lane.b32.xlu0 %v469, 126
        %v516 = vpop.permute.xlu0 %515
        %517 = vrot.lane.b32.xlu0 %v470, 126
        %v518 = vpop.permute.xlu0 %517
        %v535 = vmax.f32 %v455, %v488
        %v536 = vmax.f32 %v456, %v490
        %v537 = vmax.f32 %v457, %v492
        %v538 = vmax.f32 %v458, %v494
        %v539 = vmax.f32 %v459, %v496
        %v540 = vmax.f32 %v460, %v498
        %v541 = vmax.f32 %v461, %v500
        %v542 = vmax.f32 %v462, %v502
        %v543 = vmax.f32 %v463, %v504
        %v544 = vmax.f32 %v464, %v506
        %v545 = vmax.f32 %v465, %v508
        %v546 = vmax.f32 %v466, %v510
        %v547 = vmax.f32 %v467, %v512
        %v548 = vmax.f32 %v468, %v514
        %v549 = vmax.f32 %v469, %v516
        %v550 = vmax.f32 %v470, %v518
        %v551 = vld [vmem:[%s1] sm:$0xff]
        %v552 = vld [vmem:[%s1 + $0x8] sm:$0x1f]
        %v569 = vrot.slane %v536, 7
        %vm570 = vcmask 1041409
        %v571 = vsel %vm570, %v569, %v535
        %v572 = vrot.slane %v537, 6
        %vm573 = vcmask 1042434
        %v574 = vsel %vm573, %v572, %v571
        %v575 = vrot.slane %v538, 5
        %vm576 = vcmask 1043459
        %v577 = vsel %vm576, %v575, %v574
        %v578 = vrot.slane %v539, 4
        %vm579 = vcmask 1044484
        %v580 = vsel %vm579, %v578, %v577
        %v581 = vrot.slane %v540, 3
        %vm582 = vcmask 1045509
        %v583 = vsel %vm582, %v581, %v580
        %v584 = vrot.slane %v541, 2
        %vm585 = vcmask 1046534
        %v586 = vsel %vm585, %v584, %v583
        %v587 = vrot.slane %v542, 1
        %vm588 = vcmask 1047559
        %v589 = vsel %vm588, %v587, %v586
        %v590 = vrot.slane %v544, 7
        %v591 = vsel %vm570, %v590, %v543
        %v592 = vrot.slane %v545, 6
        %v593 = vsel %vm573, %v592, %v591
        %v594 = vrot.slane %v546, 5
        %v595 = vsel %vm576, %v594, %v593
        %v596 = vrot.slane %v547, 4
        %v597 = vsel %vm579, %v596, %v595
        %v598 = vrot.slane %v548, 3
        %v599 = vsel %vm582, %v598, %v597
        %v600 = vrot.slane %v549, 2
        %v601 = vsel %vm585, %v600, %v599
        %v602 = vrot.slane %v550, 1
        %v603 = vsel %vm588, %v602, %v601
        %vm604 = vcmask 105472
        %v605 = vsel %vm604, %v589, 0
        %v607 = vsel %vm604, %v603, 0
        %vm609 = vcmask 1044480
        %v611 = vsel %vm609, %v552, 0
        %613 = vmatprep.subr.mxu0 0.0
        %614 = vmatpush1.msra.mxu0 0.0
        %615 = vmatprep.subr.mxu0 0.0
        %616 = vmatpush1.msra.mxu0 0.0
        %617 = vmatprep.subr.mxu0 0.0
        %618 = vmatpush1.msra.mxu0 0.0
        %619 = vmatprep.subr.mxu0 0.0
        %620 = vmatpush1.msra.mxu0 0.0
        %621 = vmatprep.subr.mxu0 0.0
        %622 = vmatpush1.msra.mxu0 0.0
        %623 = vmatprep.subr.mxu0 0.0
        %624 = vmatpush1.msra.mxu0 0.0
        %625 = vmatprep.subr.mxu0 0.0
        %626 = vmatpush1.msra.mxu0 0.0
        %627 = vmatprep.subr.mxu0 0.0
        %628 = vmatpush1.msra.mxu0 0.0
        %629 = vmatprep.subr.mxu0 0.0
        %630 = vmatpush1.msra.mxu0 0.0
        %631 = vmatprep.subr.mxu0 0.0
        %632 = vmatpush1.msra.mxu0 0.0
        %633 = vmatprep.subr.mxu0 0.0
        %634 = vmatpush1.msra.mxu0 0.0
        %635 = vmatprep.subr.mxu0 0.0
        %636 = vmatpush1.msra.mxu0 0.0
        %637 = vmatprep.subr.mxu0 0.0
        %638 = vmatpush1.msra.mxu0 0.0
        %639 = vmatprep.subr.mxu0 0.0
        %640 = vmatpush1.msra.mxu0 0.0
        %641 = vmatprep.subr.mxu0 0.0
        %642 = vmatpush1.msra.mxu0 %v611
        %643 = vmatprep.subr.mxu0 0.0
        %644 = vmatpush1.msra.mxu0 %v551
        %645 = vmatprep.subr.mxu0 0.0
        %646 = vmatpush2.msra.mxu0 0.0
        %647 = vmatprep.subr.mxu0 0.0
        %648 = vmatpush2.msra.mxu0 0.0
        %649 = vmatprep.subr.mxu0 0.0
        %650 = vmatpush2.msra.mxu0 0.0
        %651 = vmatprep.subr.mxu0 0.0
        %652 = vmatpush2.msra.mxu0 0.0
        %653 = vmatprep.subr.mxu0 0.0
        %654 = vmatpush2.msra.mxu0 0.0
        %655 = vmatprep.subr.mxu0 0.0
        %656 = vmatpush2.msra.mxu0 0.0
        %657 = vmatprep.subr.mxu0 0.0
        %658 = vmatpush2.msra.mxu0 0.0
        %659 = vmatprep.subr.mxu0 0.0
        %660 = vmatpush2.msra.mxu0 0.0
        %661 = vmatprep.subr.mxu0 0.0
        %662 = vmatpush2.msra.mxu0 0.0
        %663 = vmatprep.subr.mxu0 0.0
        %664 = vmatpush2.msra.mxu0 0.0
        %665 = vmatprep.subr.mxu0 0.0
        %666 = vmatpush2.msra.mxu0 0.0
        %667 = vmatprep.subr.mxu0 0.0
        %668 = vmatpush2.msra.mxu0 0.0
        %669 = vmatprep.subr.mxu0 0.0
        %670 = vmatpush2.msra.mxu0 0.0
        %671 = vmatprep.subr.mxu0 0.0
        %672 = vmatpush2.msra.mxu0 0.0
        %673 = vmatprep.subr.mxu0 0.0
        %674 = vmatpush2.msra.mxu0 0.0
        %675 = vmatprep.subr.mxu0 0.0
        %676 = vmatpush2.msra.mxu0 0.0
        %677 = vmatprep.mubr.f32.mxu0 0.0
        %678 = vmatmul.mubr.f32.gmra.mxu0 %v605
        %v679 = vpop.f32.mrf.mxu0
        %v680 = vadd.f32 0.0, %v679
        %v681 = vpop.f32.mrf.mxu0
        %682 = vmatprep.mubr.f32.mxu0 0.0
        %683 = vmatmul.mubr.f32.gmra.mxu0 %v607
        %v684 = vpop.f32.mrf.mxu0
        %v685 = vadd.f32 0.0, %v684
        %v686 = vpop.f32.mrf.mxu0
        %687 = vdwg.mxu0
        %v690 = vcombine.high %v680, %v680
        %v691 = vcombine.high %v685, %v685
        %s694 = sld [smem:[#allocation6]]
        %v695 = vstv %s694
        %v696 = vmul.f32 %v680, %v695
        %s697 = sld [smem:[#allocation6 + $0x1]]
        %v698 = vstv %s697
        %v699 = vmul.f32 %v690, %v698
        %v700 = vadd.f32 %v696, %v699
        %s701 = sld [smem:[#allocation6 + $0x2]]
        %v702 = vstv %s701
        %v703 = vmul.f32 %v685, %v702
        %v704 = vadd.f32 %v700, %v703
        %s705 = sld [smem:[#allocation6 + $0x3]]
        %v706 = vstv %s705
        %v707 = vmul.f32 %v691, %v706
        %v708 = vadd.f32 %v704, %v707
        %s709 = sld [smem:[#allocation7]]
        %v710 = vstv %s709
        %v711 = vadd.f32 %v708, %v710
        %vm712 = vcmask 27648
        %713 = vst.msk [vmem:[%s260] sm:$0xf] %vm712, %v711
        %s714 = sld [smem:[#allocation6 + $0x80]]
        %v715 = vstv %s714
        %v716 = vmul.f32 %v680, %v715
        %s717 = sld [smem:[#allocation6 + $0x81]]
        %v718 = vstv %s717
        %v719 = vmul.f32 %v690, %v718
        %v720 = vadd.f32 %v716, %v719
        %s721 = sld [smem:[#allocation6 + $0x82]]
        %v722 = vstv %s721
        %v723 = vmul.f32 %v685, %v722
        %v724 = vadd.f32 %v720, %v723
        %s725 = sld [smem:[#allocation6 + $0x83]]
        %v726 = vstv %s725
        %v727 = vmul.f32 %v691, %v726
        %v728 = vadd.f32 %v724, %v727
        %s729 = sld [smem:[#allocation7 + $0x1]]
        %v730 = vstv %s729
        %v731 = vadd.f32 %v728, %v730
        %s732 = scalar_lea.vmem %s260, 4 [#allocation9]
        %733 = vst.msk [vmem:[%s732] sm:$0xf] %vm712, %v731
        %s734 = sand.u32 %s136, 1
        %s735 = scalar_lea.sflag [#allocation4], %s734
        %s736 = sand.u32 %s136, 1
        %s737 = smul.addr %s736, 8
        %s738 = scalar_lea.vmem [#allocation9], %s737
        // Predicated region
        $region49: #{tpu_custom_call.1} parent=35 // pred_check
          %p739 = pneg %p146
        $region50: #{tpu_custom_call.1} parent=35 // pred_check_branch
          %741 = sbr.rel (%p739) target = $region52
        $region51: #{tpu_custom_call.1} parent=35 // pred_region
          %s743 = ssub.s32 128, 128
          %744 = vsyncadd %s735, %s743
          %s745 = smul.addr %s27, 2
          %s746 = sadd.s32 %s28, %s745
          %s747 = smul.addr %s746, 64
          %s748 = scalar_lea.hbm %s4, %s747
          %s749 = sshll.u32 %s738, 4
          %s750 = int_to_ptr.vmem [resolvable:$true] %s749
          %755 = dma.vmem_to_hbm [thread:$0]  %s750, 128, %s748, %s735, 64, 64, 4
        $region52: #{tpu_custom_call.1} parent=35 // pred_fallthru
          _
      $region36: #{tpu_custom_call.1} parent=5 // pred_fallthru
        _
      %p756 = scmp.le.s32.totalorder 2, %s18
      // Predicated region
      $region53: #{tpu_custom_call.1} parent=5 // pred_check
        %p757 = pneg %p756
      $region54: #{tpu_custom_call.1} parent=5 // pred_check_branch
        %759 = sbr.rel (%p757) target = $region56
      $region55: #{tpu_custom_call.1} parent=5 // pred_region
        %s760 = ssub.s32 %s18, 2
        // Predicated region
        $region57: #{tpu_custom_call.1} parent=55 // pred_check
          %p761 = pneg %p152
        $region58: #{tpu_custom_call.1} parent=55 // pred_check_branch
          %763 = sbr.rel (%p761) target = $region60
        $region59: #{tpu_custom_call.1} parent=55 // pred_region
          %s764 = sand.u32 %s137, 1
          %s765 = scalar_lea.sflag [#allocation4], %s764
          %s766 = sand.u32 %s137, 1
          %s767 = smul.addr %s766, 8
          %s768 = scalar_lea.vmem [#allocation9], %s767
          %769 = dma.done %s765, 128
        $region60: #{tpu_custom_call.1} parent=55 // pred_fallthru
          _
      $region56: #{tpu_custom_call.1} parent=5 // pred_fallthru
        _
    $region6: #{tpu_custom_call.1} parent=1 // loop_footer
      %s22 = sadd.s32 1, %s18
    $region7: #{tpu_custom_call.1} parent=1 // loop_footer_branch
      %17 = sbr.rel target = $region3
    $region8: #{tpu_custom_call.1} parent=1 // loop_exit
      _
    %770 = vsyncpa [#allocation3], 1
    %s771 = scalar_lea.sflag [#allocation3], 1
    %772 = vsyncpa %s771, 1
    %773 = vsyncpa [#allocation4], 1
    %s774 = scalar_lea.sflag [#allocation4], 1
    %775 = vsyncpa %s774, 1
    %776 = vsyncpa [#allocation5], 1
    %s777 = scalar_lea.sflag [#allocation5], 1
    %778 = vsyncpa %s777, 1
    %779 = vsyncpa [#allocation8], 1

</llo_original>
